<compile_context>
chip_gen: v5e
topology: v5e:2x2
jax: 0.10.0
libtpu: 0.0.40
codegen_flags: <defaults>
</compile_context>

<pallas_src>
import jax
import jax.numpy as jnp
from jax.experimental import pallas as pl
from jax.experimental.pallas import tpu as pltpu

_LANE = 128


def listmle_kernel(out_ref, lbl_ref, contrib_ref):
    """One lane-block of the batch per grid step.

    out_ref     : (N, blk_B) f32 VMEM block  (outputs, transposed: list dim on sublanes)
    lbl_ref     : (N, blk_B) i32 VMEM block  (per-column permutation of [0, N))
    contrib_ref : (1, blk_B) f32 output block; contrib[b] = sum_t(scores[t,b] - out[t,b])
    """
    n, blk = out_ref.shape
    out = out_ref[...]                                              # (N, blk) f32
    kidx = jax.lax.broadcasted_iota(jnp.int32, (n, blk), 0)         # hoisted row-index iota

    def gather_row(t):
        # g_t[b] = out[lbl[t, b], b]  — predicate + select + sublane reduce (lane-dense);
        # no dynamic cross-lane gather on TPU.
        sel = jnp.where(kidx == lbl_ref[t:t + 1, :], out, 0.0)      # (N, blk)
        return jnp.sum(sel, axis=0, keepdims=True)                  # (1, blk)

    # Running-prefix-max logcumsumexp scan (numerically matches torch.logcumsumexp).
    g0 = gather_row(0)
    m = g0                        # prefix max
    s = jnp.ones_like(g0)         # prefix sum of exp(g - m)
    ssum = g0                     # running sum of scores; score_0 == g_0
    # TODO(synk): for large N, switch this static unroll to lax.fori_loop (and an MXU
    #             triangular-cumsum variant) to bound code size; N here is the small
    #             ranking-list length typical of ListMLE.
    for t in range(1, n):
        g_t = gather_row(t)
        m_new = jnp.maximum(m, g_t)
        s = s * jnp.exp(m - m_new) + jnp.exp(g_t - m_new)
        m = m_new
        ssum = ssum + (m + jnp.log(s))

    contrib_ref[...] = ssum - jnp.sum(out, axis=0, keepdims=True)   # (1, blk)


def _round_up(x, m):
    return ((x + m - 1) // m) * m


def _per_col_bytes(n):
    # Double-buffered f32 + i32 input blocks (2 * 2 * 4 * n), double-buffered (1, blk) f32
    # output (8), and live in-kernel temporaries (out/iota/select values + scan carries).
    return 32 * n + 24


def _pick_block_cols(batch, n, budget_bytes=24 << 20, max_cols=4096):
    """Largest lane-block (multiple of 128) whose full VMEM footprint fits the budget."""
    fit = max(_LANE, (budget_bytes // _per_col_bytes(n)) // _LANE * _LANE)
    want = _round_up(max(batch, 1), _LANE)
    return int(min(fit, max_cols, want))


def listmle_loss(outputs, labels, *, block_cols=None):
    """outputs: (B, N) float; labels: (B, N) int permutation per row -> scalar loss."""
    outputs = jnp.asarray(outputs, jnp.float32)
    labels = jnp.asarray(labels, jnp.int32)
    batch, n = outputs.shape

    if block_cols is None:
        block_cols = _pick_block_cols(batch, n)
    block_cols = _round_up(int(block_cols), _LANE)

    num_blocks = -(-batch // block_cols)
    b_pad = num_blocks * block_cols

    # Transposed, lane-dense layout: batch rides the lane axis. Padding columns get zero
    # outputs / zero labels; they produce finite garbage that the wrapper slices off.
    out_t = jnp.zeros((n, b_pad), jnp.float32).at[:, :batch].set(outputs.T)
    lbl_t = jnp.zeros((n, b_pad), jnp.int32).at[:, :batch].set(labels.T)

    # VMEM plan: computed footprint, never above 48 MiB (headroom under v7x's 64 MiB).
    footprint = _per_col_bytes(n) * block_cols + (2 << 20)
    vmem_limit = int(min(48 << 20, max(32 << 20, 2 * footprint)))

    contrib = pl.pallas_call(
        listmle_kernel,
        out_shape=jax.ShapeDtypeStruct((1, b_pad), jnp.float32),
        grid=(num_blocks,),
        in_specs=[
            pl.BlockSpec((n, block_cols), lambda i: (0, i)),
            pl.BlockSpec((n, block_cols), lambda i: (0, i)),
        ],
        out_specs=pl.BlockSpec((1, block_cols), lambda i: (0, i)),
        compiler_params=pltpu.CompilerParams(
            dimension_semantics=("parallel",),
            vmem_limit_bytes=vmem_limit,
        ),
    )(out_t, lbl_t)

    # Final reduction (masking of batch padding + mean) in plain JAX: tiny O(B) work.
    return jnp.sum(contrib[0, :batch]) / (batch * n)


if __name__ == "__main__":
    key = jax.random.PRNGKey(0)

    def make_inputs(k, b, n):
        k_out, k_perm = jax.random.split(k)
        out = jax.random.normal(k_out, (b, n), dtype=jnp.float32)
        perms = jax.vmap(lambda kk: jax.random.permutation(kk, n))(
            jax.random.split(k_perm, b)
        ).astype(jnp.int32)
        return out, perms

    def reference(out, lbl):
        g = jnp.take_along_axis(out, lbl, axis=1)
        n = out.shape[1]
        scores = jnp.stack(
            [jax.nn.logsumexp(g[:, : i + 1], axis=1) for i in range(n)], axis=1
        )
        return jnp.mean(scores - out)

    # Small case matching the module's typical usage.
    k1, k2 = jax.random.split(key)
    outputs, labels = make_inputs(k1, 2, 8)
    loss = listmle_loss(outputs, labels)
    jax.block_until_ready(loss)
    ref = reference(outputs, labels)
    assert jnp.allclose(loss, ref, rtol=1e-5, atol=1e-5), (loss, ref)

    # Gridded path: multiple lane blocks + batch padding sliced off in the wrapper.
    outputs2, labels2 = make_inputs(k2, 300, 8)
    loss2 = listmle_loss(outputs2, labels2, block_cols=128)
    jax.block_until_ready(loss2)
    ref2 = reference(outputs2, labels2)
    assert jnp.allclose(loss2, ref2, rtol=1e-5, atol=2e-5), (loss2, ref2)

    print("KERNEL_OK")
</pallas_src>

<mosaic_0001>
module attributes {stable_mosaic.version = 11 : i64} {
  func.func @listmle_kernel(%arg0: i32, %arg1: memref<8x128xf32, #tpu.memory_space<vmem>>, %arg2: memref<8x128xi32, #tpu.memory_space<vmem>>, %arg3: memref<1x128xf32, #tpu.memory_space<vmem>>) attributes {dimension_semantics = [#tpu.dimension_semantics<parallel>], iteration_bounds = array<i64: 1>, scalar_prefetch = 0 : i64, scratch_operands = 0 : i64, tpu.core_type = #tpu.core_type<tc>, window_params = [{transform_indices = @transform_0, window_bounds = array<i64: 8, 128>}, {transform_indices = @transform_1, window_bounds = array<i64: 8, 128>}, {transform_indices = @transform_2, window_bounds = array<i64: 1, 128>}]} {
    %c0 = arith.constant 0 : index
    %c0_0 = arith.constant 0 : index
    %0 = vector.load %arg1[%c0, %c0_0] : memref<8x128xf32, #tpu.memory_space<vmem>>, vector<8x128xf32>
    %1 = tpu.iota {dimensions = array<i32: 0>} : vector<8x128xi32>
    %c0_1 = arith.constant 0 : index
    %c0_2 = arith.constant 0 : index
    %2 = vector.load %arg2[%c0_1, %c0_2] : memref<8x128xi32, #tpu.memory_space<vmem>>, vector<1x128xi32>
    %3 = vector.broadcast %2 : vector<1x128xi32> to vector<8x128xi32>
    %4 = arith.cmpi eq, %1, %3 : vector<8x128xi32>
    %cst = arith.constant 0.000000e+00 : f32
    %5 = vector.broadcast %cst : f32 to vector<8x128xf32>
    %6 = arith.select %4, %0, %5 : vector<8x128xi1>, vector<8x128xf32>
    %cst_3 = arith.constant dense<0.000000e+00> : vector<128xf32>
    %7 = vector.multi_reduction <add>, %6, %cst_3 [0] : vector<8x128xf32> to vector<128xf32>
    %8 = vector.shape_cast %7 : vector<128xf32> to vector<1x128xf32>
    %cst_4 = arith.constant 1.000000e+00 : f32
    %9 = vector.broadcast %cst_4 : f32 to vector<1x128xf32>
    %c1 = arith.constant 1 : index
    %c0_5 = arith.constant 0 : index
    %10 = vector.load %arg2[%c1, %c0_5] : memref<8x128xi32, #tpu.memory_space<vmem>>, vector<1x128xi32>
    %11 = vector.broadcast %10 : vector<1x128xi32> to vector<8x128xi32>
    %12 = arith.cmpi eq, %1, %11 : vector<8x128xi32>
    %cst_6 = arith.constant 0.000000e+00 : f32
    %13 = vector.broadcast %cst_6 : f32 to vector<8x128xf32>
    %14 = arith.select %12, %0, %13 : vector<8x128xi1>, vector<8x128xf32>
    %cst_7 = arith.constant dense<0.000000e+00> : vector<128xf32>
    %15 = vector.multi_reduction <add>, %14, %cst_7 [0] : vector<8x128xf32> to vector<128xf32>
    %16 = vector.shape_cast %15 : vector<128xf32> to vector<1x128xf32>
    %17 = arith.maximumf %8, %16 : vector<1x128xf32>
    %18 = arith.subf %8, %17 : vector<1x128xf32>
    %19 = math.exp %18 : vector<1x128xf32>
    %20 = arith.mulf %9, %19 : vector<1x128xf32>
    %21 = arith.subf %16, %17 : vector<1x128xf32>
    %22 = math.exp %21 : vector<1x128xf32>
    %23 = arith.addf %20, %22 : vector<1x128xf32>
    %24 = math.log %23 : vector<1x128xf32>
    %25 = arith.addf %17, %24 : vector<1x128xf32>
    %26 = arith.addf %8, %25 : vector<1x128xf32>
    %c2 = arith.constant 2 : index
    %c0_8 = arith.constant 0 : index
    %27 = vector.load %arg2[%c2, %c0_8] : memref<8x128xi32, #tpu.memory_space<vmem>>, vector<1x128xi32>
    %28 = vector.broadcast %27 : vector<1x128xi32> to vector<8x128xi32>
    %29 = arith.cmpi eq, %1, %28 : vector<8x128xi32>
    %cst_9 = arith.constant 0.000000e+00 : f32
    %30 = vector.broadcast %cst_9 : f32 to vector<8x128xf32>
    %31 = arith.select %29, %0, %30 : vector<8x128xi1>, vector<8x128xf32>
    %cst_10 = arith.constant dense<0.000000e+00> : vector<128xf32>
    %32 = vector.multi_reduction <add>, %31, %cst_10 [0] : vector<8x128xf32> to vector<128xf32>
    %33 = vector.shape_cast %32 : vector<128xf32> to vector<1x128xf32>
    %34 = arith.maximumf %17, %33 : vector<1x128xf32>
    %35 = arith.subf %17, %34 : vector<1x128xf32>
    %36 = math.exp %35 : vector<1x128xf32>
    %37 = arith.mulf %23, %36 : vector<1x128xf32>
    %38 = arith.subf %33, %34 : vector<1x128xf32>
    %39 = math.exp %38 : vector<1x128xf32>
    %40 = arith.addf %37, %39 : vector<1x128xf32>
    %41 = math.log %40 : vector<1x128xf32>
    %42 = arith.addf %34, %41 : vector<1x128xf32>
    %43 = arith.addf %26, %42 : vector<1x128xf32>
    %c3 = arith.constant 3 : index
    %c0_11 = arith.constant 0 : index
    %44 = vector.load %arg2[%c3, %c0_11] : memref<8x128xi32, #tpu.memory_space<vmem>>, vector<1x128xi32>
    %45 = vector.broadcast %44 : vector<1x128xi32> to vector<8x128xi32>
    %46 = arith.cmpi eq, %1, %45 : vector<8x128xi32>
    %cst_12 = arith.constant 0.000000e+00 : f32
    %47 = vector.broadcast %cst_12 : f32 to vector<8x128xf32>
    %48 = arith.select %46, %0, %47 : vector<8x128xi1>, vector<8x128xf32>
    %cst_13 = arith.constant dense<0.000000e+00> : vector<128xf32>
    %49 = vector.multi_reduction <add>, %48, %cst_13 [0] : vector<8x128xf32> to vector<128xf32>
    %50 = vector.shape_cast %49 : vector<128xf32> to vector<1x128xf32>
    %51 = arith.maximumf %34, %50 : vector<1x128xf32>
    %52 = arith.subf %34, %51 : vector<1x128xf32>
    %53 = math.exp %52 : vector<1x128xf32>
    %54 = arith.mulf %40, %53 : vector<1x128xf32>
    %55 = arith.subf %50, %51 : vector<1x128xf32>
    %56 = math.exp %55 : vector<1x128xf32>
    %57 = arith.addf %54, %56 : vector<1x128xf32>
    %58 = math.log %57 : vector<1x128xf32>
    %59 = arith.addf %51, %58 : vector<1x128xf32>
    %60 = arith.addf %43, %59 : vector<1x128xf32>
    %c4 = arith.constant 4 : index
    %c0_14 = arith.constant 0 : index
    %61 = vector.load %arg2[%c4, %c0_14] : memref<8x128xi32, #tpu.memory_space<vmem>>, vector<1x128xi32>
    %62 = vector.broadcast %61 : vector<1x128xi32> to vector<8x128xi32>
    %63 = arith.cmpi eq, %1, %62 : vector<8x128xi32>
    %cst_15 = arith.constant 0.000000e+00 : f32
    %64 = vector.broadcast %cst_15 : f32 to vector<8x128xf32>
    %65 = arith.select %63, %0, %64 : vector<8x128xi1>, vector<8x128xf32>
    %cst_16 = arith.constant dense<0.000000e+00> : vector<128xf32>
    %66 = vector.multi_reduction <add>, %65, %cst_16 [0] : vector<8x128xf32> to vector<128xf32>
    %67 = vector.shape_cast %66 : vector<128xf32> to vector<1x128xf32>
    %68 = arith.maximumf %51, %67 : vector<1x128xf32>
    %69 = arith.subf %51, %68 : vector<1x128xf32>
    %70 = math.exp %69 : vector<1x128xf32>
    %71 = arith.mulf %57, %70 : vector<1x128xf32>
    %72 = arith.subf %67, %68 : vector<1x128xf32>
    %73 = math.exp %72 : vector<1x128xf32>
    %74 = arith.addf %71, %73 : vector<1x128xf32>
    %75 = math.log %74 : vector<1x128xf32>
    %76 = arith.addf %68, %75 : vector<1x128xf32>
    %77 = arith.addf %60, %76 : vector<1x128xf32>
    %c5 = arith.constant 5 : index
    %c0_17 = arith.constant 0 : index
    %78 = vector.load %arg2[%c5, %c0_17] : memref<8x128xi32, #tpu.memory_space<vmem>>, vector<1x128xi32>
    %79 = vector.broadcast %78 : vector<1x128xi32> to vector<8x128xi32>
    %80 = arith.cmpi eq, %1, %79 : vector<8x128xi32>
    %cst_18 = arith.constant 0.000000e+00 : f32
    %81 = vector.broadcast %cst_18 : f32 to vector<8x128xf32>
    %82 = arith.select %80, %0, %81 : vector<8x128xi1>, vector<8x128xf32>
    %cst_19 = arith.constant dense<0.000000e+00> : vector<128xf32>
    %83 = vector.multi_reduction <add>, %82, %cst_19 [0] : vector<8x128xf32> to vector<128xf32>
    %84 = vector.shape_cast %83 : vector<128xf32> to vector<1x128xf32>
    %85 = arith.maximumf %68, %84 : vector<1x128xf32>
    %86 = arith.subf %68, %85 : vector<1x128xf32>
    %87 = math.exp %86 : vector<1x128xf32>
    %88 = arith.mulf %74, %87 : vector<1x128xf32>
    %89 = arith.subf %84, %85 : vector<1x128xf32>
    %90 = math.exp %89 : vector<1x128xf32>
    %91 = arith.addf %88, %90 : vector<1x128xf32>
    %92 = math.log %91 : vector<1x128xf32>
    %93 = arith.addf %85, %92 : vector<1x128xf32>
    %94 = arith.addf %77, %93 : vector<1x128xf32>
    %c6 = arith.constant 6 : index
    %c0_20 = arith.constant 0 : index
    %95 = vector.load %arg2[%c6, %c0_20] : memref<8x128xi32, #tpu.memory_space<vmem>>, vector<1x128xi32>
    %96 = vector.broadcast %95 : vector<1x128xi32> to vector<8x128xi32>
    %97 = arith.cmpi eq, %1, %96 : vector<8x128xi32>
    %cst_21 = arith.constant 0.000000e+00 : f32
    %98 = vector.broadcast %cst_21 : f32 to vector<8x128xf32>
    %99 = arith.select %97, %0, %98 : vector<8x128xi1>, vector<8x128xf32>
    %cst_22 = arith.constant dense<0.000000e+00> : vector<128xf32>
    %100 = vector.multi_reduction <add>, %99, %cst_22 [0] : vector<8x128xf32> to vector<128xf32>
    %101 = vector.shape_cast %100 : vector<128xf32> to vector<1x128xf32>
    %102 = arith.maximumf %85, %101 : vector<1x128xf32>
    %103 = arith.subf %85, %102 : vector<1x128xf32>
    %104 = math.exp %103 : vector<1x128xf32>
    %105 = arith.mulf %91, %104 : vector<1x128xf32>
    %106 = arith.subf %101, %102 : vector<1x128xf32>
    %107 = math.exp %106 : vector<1x128xf32>
    %108 = arith.addf %105, %107 : vector<1x128xf32>
    %109 = math.log %108 : vector<1x128xf32>
    %110 = arith.addf %102, %109 : vector<1x128xf32>
    %111 = arith.addf %94, %110 : vector<1x128xf32>
    %c7 = arith.constant 7 : index
    %c0_23 = arith.constant 0 : index
    %112 = vector.load %arg2[%c7, %c0_23] : memref<8x128xi32, #tpu.memory_space<vmem>>, vector<1x128xi32>
    %113 = vector.broadcast %112 : vector<1x128xi32> to vector<8x128xi32>
    %114 = arith.cmpi eq, %1, %113 : vector<8x128xi32>
    %cst_24 = arith.constant 0.000000e+00 : f32
    %115 = vector.broadcast %cst_24 : f32 to vector<8x128xf32>
    %116 = arith.select %114, %0, %115 : vector<8x128xi1>, vector<8x128xf32>
    %cst_25 = arith.constant dense<0.000000e+00> : vector<128xf32>
    %117 = vector.multi_reduction <add>, %116, %cst_25 [0] : vector<8x128xf32> to vector<128xf32>
    %118 = vector.shape_cast %117 : vector<128xf32> to vector<1x128xf32>
    %119 = arith.maximumf %102, %118 : vector<1x128xf32>
    %120 = arith.subf %102, %119 : vector<1x128xf32>
    %121 = math.exp %120 : vector<1x128xf32>
    %122 = arith.mulf %108, %121 : vector<1x128xf32>
    %123 = arith.subf %118, %119 : vector<1x128xf32>
    %124 = math.exp %123 : vector<1x128xf32>
    %125 = arith.addf %122, %124 : vector<1x128xf32>
    %126 = math.log %125 : vector<1x128xf32>
    %127 = arith.addf %119, %126 : vector<1x128xf32>
    %128 = arith.addf %111, %127 : vector<1x128xf32>
    %cst_26 = arith.constant dense<0.000000e+00> : vector<128xf32>
    %129 = vector.multi_reduction <add>, %0, %cst_26 [0] : vector<8x128xf32> to vector<128xf32>
    %130 = vector.shape_cast %129 : vector<128xf32> to vector<1x128xf32>
    %131 = arith.subf %128, %130 : vector<1x128xf32>
    %c0_27 = arith.constant 0 : index
    %c0_28 = arith.constant 0 : index
    %132 = vector.load %arg3[%c0_27, %c0_28] : memref<1x128xf32, #tpu.memory_space<vmem>>, vector<1x128xf32>
    tpu.vector_store %arg3[%c0_27, %c0_28], %131 {strides = array<i32>} : memref<1x128xf32, #tpu.memory_space<vmem>>, vector<1x128xf32>,
    return
  }
  func.func @transform_0(%arg0: i32) -> (i32, i32) {
    %c0_i32 = arith.constant 0 : i32
    %c0_i32_0 = arith.constant 0 : i32
    return %c0_i32, %arg0 : i32, i32
  }
  func.func @transform_1(%arg0: i32) -> (i32, i32) {
    %c0_i32 = arith.constant 0 : i32
    %c0_i32_0 = arith.constant 0 : i32
    return %c0_i32, %arg0 : i32, i32
  }
  func.func @transform_2(%arg0: i32) -> (i32, i32) {
    %c0_i32 = arith.constant 0 : i32
    %c0_i32_0 = arith.constant 0 : i32
    return %c0_i32, %arg0 : i32, i32
  }
}

</mosaic_0001>

<llo_original>
// kernel: tpu_custom_call.1
$region0: #{tpu_custom_call.1}
  #allocation0 [shape = 'u32[]', space=smem, size = 0x4, offset = 0x4, fixed_abs, tag = 'smem constant byte address 0x4 - core index']
  #allocation1 [shape = 'u32[72,128]{1,0:T(1,128)}', space=vmem, size = 0x9000, scoped, tag = 'internal scratch']
  %s0 = inlined_call_operand.hbm [shape: f32[8,128], index: 0, kind: input, shape index: {}]
  %s1 = inlined_call_operand.hbm [shape: s32[8,128], index: 1, kind: input, shape index: {}]
  %s2 = inlined_call_operand.hbm [shape: f32[1,128], index: 2, kind: output, shape index: {}]
  %s3 = sld [smem:[#allocation0]]
  $region26: #{tpu_custom_call.1} parent=0
    _
  %s5 = ssub.s32 1, %s3
  %s6 = scalar_select 0, %s5, %s3
  $region1: #{tpu_custom_call.1} parent=0
    #allocation2 [shape = 'u8[4096]{0}', space=vmem, size = 0x1000, scoped, tag = 'input window, operand 0, single buffered']
    #allocation3 [shape = 's32[1]{0}', space=sflag, size = 0x4, scoped, tag = 'scoped memory for tpu_custom_call.1']
    #allocation4 [shape = 's32[1]{0}', space=sflag, size = 0x4, scoped, tag = 'scoped memory for tpu_custom_call.1']
    #allocation5 [shape = 'u8[4096]{0}', space=vmem, size = 0x1000, scoped, tag = 'input window, operand 1, single buffered']
    #allocation6 [shape = 's32[1]{0}', space=sflag, size = 0x4, scoped, tag = 'scoped memory for tpu_custom_call.1']
    #allocation7 [shape = 'u8[512]{0}', space=vmem, size = 0x400, scoped, tag = 'output window, operand 0, single buffered']
    %7 = vsyncpa [#allocation3], 0
    %8 = vsyncpa [#allocation6], 0
    %9 = vsyncpa [#allocation4], 0
    // Predicated region
    $region2: #{tpu_custom_call.1} parent=1 // pred_check
      _
    $region3: #{tpu_custom_call.1} parent=1 // pred_check_branch
      %11 = sbr.rel (0) target = $region5
    $region4: #{tpu_custom_call.1} parent=1 // pred_region
      %13 = vsyncadd [#allocation3], 0
      %s15 = sshll.u32 %s0, 4
      %s16 = int_to_ptr.hbm [resolvable:$true] %s15
      %s17 = sshll.u32 [#allocation2], 4
      %s18 = int_to_ptr.vmem [resolvable:$true] %s17
      %20 = dma.hbm_to_vmem [thread:$0]  %s16, 128, %s18, [#allocation3]
    $region5: #{tpu_custom_call.1} parent=1 // pred_fallthru
      _
    // Predicated region
    $region6: #{tpu_custom_call.1} parent=1 // pred_check
      _
    $region7: #{tpu_custom_call.1} parent=1 // pred_check_branch
      %22 = sbr.rel (0) target = $region9
    $region8: #{tpu_custom_call.1} parent=1 // pred_region
      %24 = vsyncadd [#allocation6], 0
      %s26 = sshll.u32 %s1, 4
      %s27 = int_to_ptr.hbm [resolvable:$true] %s26
      %s28 = sshll.u32 [#allocation5], 4
      %s29 = int_to_ptr.vmem [resolvable:$true] %s28
      %31 = dma.hbm_to_vmem [thread:$0]  %s27, 128, %s29, [#allocation6]
    $region9: #{tpu_custom_call.1} parent=1 // pred_fallthru
      _
    // Predicated region
    $region10: #{tpu_custom_call.1} parent=1 // pred_check
      _
    $region11: #{tpu_custom_call.1} parent=1 // pred_check_branch
      %33 = sbr.rel (0) target = $region13
    $region12: #{tpu_custom_call.1} parent=1 // pred_region
      %35 = dma.done [#allocation3], 128
    $region13: #{tpu_custom_call.1} parent=1 // pred_fallthru
      _
    // Predicated region
    $region14: #{tpu_custom_call.1} parent=1 // pred_check
      _
    $region15: #{tpu_custom_call.1} parent=1 // pred_check_branch
      %37 = sbr.rel (0) target = $region17
    $region16: #{tpu_custom_call.1} parent=1 // pred_region
      %39 = dma.done [#allocation6], 128
    $region17: #{tpu_custom_call.1} parent=1 // pred_fallthru
      _
    %v40 = vld [vmem:[#allocation2] sm:$0xff]
    %v41 = vlaneseq
    %v42 = vshrl.u32 %v41, 7
    %v43 = vld [vmem:[#allocation5] sm:$0x1]
    %v44 = vperm.slane %v43, 0
    %vm45 = vcmp.eq.s32.totalorder %v42, %v44
    %v46 = vsel %vm45, %v40, 0.0
    %v47 = vrot.slane %v46, 4
    %v48 = vadd.f32 %v46, %v47
    %v49 = vrot.slane %v48, 2
    %v50 = vadd.f32 %v48, %v49
    %v51 = vrot.slane %v50, 1
    %v52 = vadd.f32 %v50, %v51
    %v53 = vld [vmem:[#allocation5 + $0x1] sm:$0x1]
    %v54 = vperm.slane %v53, 0
    %vm55 = vcmp.eq.s32.totalorder %v42, %v54
    %v56 = vsel %vm55, %v40, 0.0
    %v57 = vrot.slane %v56, 4
    %v58 = vadd.f32 %v56, %v57
    %v59 = vrot.slane %v58, 2
    %v60 = vadd.f32 %v58, %v59
    %v61 = vrot.slane %v60, 1
    %v62 = vadd.f32 %v60, %v61
    %v63 = vmax.f32 %v52, %v62
    %v64 = vsub.f32 %v52, %v63
    %v65 = vmul.f32 %v64, 1.442695
    %v66 = vpow.pop %v65
    %v67 = vsub.f32 %v62, %v63
    %v68 = vmul.f32 %v67, 1.442695
    %v69 = vpow.pop %v68
    %v70 = vadd.f32 %v66, %v69
    %v71 = vlog2.pop %v70
    %v72 = vmul.f32 %v71, 0.6931472
    %v73 = vadd.f32 %v63, %v72
    %v74 = vadd.f32 %v52, %v73
    %v75 = vld [vmem:[#allocation5 + $0x2] sm:$0x1]
    %v76 = vperm.slane %v75, 0
    %vm77 = vcmp.eq.s32.totalorder %v42, %v76
    %v78 = vsel %vm77, %v40, 0.0
    %v79 = vrot.slane %v78, 4
    %v80 = vadd.f32 %v78, %v79
    %v81 = vrot.slane %v80, 2
    %v82 = vadd.f32 %v80, %v81
    %v83 = vrot.slane %v82, 1
    %v84 = vadd.f32 %v82, %v83
    %v85 = vmax.f32 %v63, %v84
    %v86 = vsub.f32 %v63, %v85
    %v87 = vmul.f32 %v86, 1.442695
    %v88 = vpow.pop %v87
    %v89 = vmul.f32 %v70, %v88
    %v90 = vsub.f32 %v84, %v85
    %v91 = vmul.f32 %v90, 1.442695
    %v92 = vpow.pop %v91
    %v93 = vadd.f32 %v89, %v92
    %v94 = vlog2.pop %v93
    %v95 = vmul.f32 %v94, 0.6931472
    %v96 = vadd.f32 %v85, %v95
    %v97 = vadd.f32 %v74, %v96
    %v98 = vld [vmem:[#allocation5 + $0x3] sm:$0x1]
    %v99 = vperm.slane %v98, 0
    %vm100 = vcmp.eq.s32.totalorder %v42, %v99
    %v101 = vsel %vm100, %v40, 0.0
    %v102 = vrot.slane %v101, 4
    %v103 = vadd.f32 %v101, %v102
    %v104 = vrot.slane %v103, 2
    %v105 = vadd.f32 %v103, %v104
    %v106 = vrot.slane %v105, 1
    %v107 = vadd.f32 %v105, %v106
    %v108 = vmax.f32 %v85, %v107
    %v109 = vsub.f32 %v85, %v108
    %v110 = vmul.f32 %v109, 1.442695
    %v111 = vpow.pop %v110
    %v112 = vmul.f32 %v93, %v111
    %v113 = vsub.f32 %v107, %v108
    %v114 = vmul.f32 %v113, 1.442695
    %v115 = vpow.pop %v114
    %v116 = vadd.f32 %v112, %v115
    %v117 = vlog2.pop %v116
    %v118 = vmul.f32 %v117, 0.6931472
    %v119 = vadd.f32 %v108, %v118
    %v120 = vadd.f32 %v97, %v119
    %v121 = vld [vmem:[#allocation5 + $0x4] sm:$0x1]
    %v122 = vperm.slane %v121, 0
    %vm123 = vcmp.eq.s32.totalorder %v42, %v122
    %v124 = vsel %vm123, %v40, 0.0
    %v125 = vrot.slane %v124, 4
    %v126 = vadd.f32 %v124, %v125
    %v127 = vrot.slane %v126, 2
    %v128 = vadd.f32 %v126, %v127
    %v129 = vrot.slane %v128, 1
    %v130 = vadd.f32 %v128, %v129
    %v131 = vmax.f32 %v108, %v130
    %v132 = vsub.f32 %v108, %v131
    %v133 = vmul.f32 %v132, 1.442695
    %v134 = vpow.pop %v133
    %v135 = vmul.f32 %v116, %v134
    %v136 = vsub.f32 %v130, %v131
    %v137 = vmul.f32 %v136, 1.442695
    %v138 = vpow.pop %v137
    %v139 = vadd.f32 %v135, %v138
    %v140 = vlog2.pop %v139
    %v141 = vmul.f32 %v140, 0.6931472
    %v142 = vadd.f32 %v131, %v141
    %v143 = vadd.f32 %v120, %v142
    %v144 = vld [vmem:[#allocation5 + $0x5] sm:$0x1]
    %v145 = vperm.slane %v144, 0
    %vm146 = vcmp.eq.s32.totalorder %v42, %v145
    %v147 = vsel %vm146, %v40, 0.0
    %v148 = vrot.slane %v147, 4
    %v149 = vadd.f32 %v147, %v148
    %v150 = vrot.slane %v149, 2
    %v151 = vadd.f32 %v149, %v150
    %v152 = vrot.slane %v151, 1
    %v153 = vadd.f32 %v151, %v152
    %v154 = vmax.f32 %v131, %v153
    %v155 = vsub.f32 %v131, %v154
    %v156 = vmul.f32 %v155, 1.442695
    %v157 = vpow.pop %v156
    %v158 = vmul.f32 %v139, %v157
    %v159 = vsub.f32 %v153, %v154
    %v160 = vmul.f32 %v159, 1.442695
    %v161 = vpow.pop %v160
    %v162 = vadd.f32 %v158, %v161
    %v163 = vlog2.pop %v162
    %v164 = vmul.f32 %v163, 0.6931472
    %v165 = vadd.f32 %v154, %v164
    %v166 = vadd.f32 %v143, %v165
    %v167 = vld [vmem:[#allocation5 + $0x6] sm:$0x1]
    %v168 = vperm.slane %v167, 0
    %vm169 = vcmp.eq.s32.totalorder %v42, %v168
    %v170 = vsel %vm169, %v40, 0.0
    %v171 = vrot.slane %v170, 4
    %v172 = vadd.f32 %v170, %v171
    %v173 = vrot.slane %v172, 2
    %v174 = vadd.f32 %v172, %v173
    %v175 = vrot.slane %v174, 1
    %v176 = vadd.f32 %v174, %v175
    %v177 = vmax.f32 %v154, %v176
    %v178 = vsub.f32 %v154, %v177
    %v179 = vmul.f32 %v178, 1.442695
    %v180 = vpow.pop %v179
    %v181 = vmul.f32 %v162, %v180
    %v182 = vsub.f32 %v176, %v177
    %v183 = vmul.f32 %v182, 1.442695
    %v184 = vpow.pop %v183
    %v185 = vadd.f32 %v181, %v184
    %v186 = vlog2.pop %v185
    %v187 = vmul.f32 %v186, 0.6931472
    %v188 = vadd.f32 %v177, %v187
    %v189 = vadd.f32 %v166, %v188
    %v190 = vld [vmem:[#allocation5 + $0x7] sm:$0x1]
    %v191 = vperm.slane %v190, 0
    %vm192 = vcmp.eq.s32.totalorder %v42, %v191
    %v193 = vsel %vm192, %v40, 0.0
    %v194 = vrot.slane %v193, 4
    %v195 = vadd.f32 %v193, %v194
    %v196 = vrot.slane %v195, 2
    %v197 = vadd.f32 %v195, %v196
    %v198 = vrot.slane %v197, 1
    %v199 = vadd.f32 %v197, %v198
    %v200 = vmax.f32 %v177, %v199
    %v201 = vsub.f32 %v177, %v200
    %v202 = vmul.f32 %v201, 1.442695
    %v203 = vpow.pop %v202
    %v204 = vmul.f32 %v185, %v203
    %v205 = vsub.f32 %v199, %v200
    %v206 = vmul.f32 %v205, 1.442695
    %v207 = vpow.pop %v206
    %v208 = vadd.f32 %v204, %v207
    %v209 = vlog2.pop %v208
    %v210 = vmul.f32 %v209, 0.6931472
    %v211 = vadd.f32 %v200, %v210
    %v212 = vadd.f32 %v189, %v211
    %v213 = vrot.slane %v40, 4
    %v214 = vadd.f32 %v40, %v213
    %v215 = vrot.slane %v214, 2
    %v216 = vadd.f32 %v214, %v215
    %v217 = vrot.slane %v216, 1
    %v218 = vadd.f32 %v216, %v217
    %v219 = vsub.f32 %v212, %v218
    %220 = vst [vmem:[#allocation7] sm:$0x1] %v219
    // Predicated region
    $region18: #{tpu_custom_call.1} parent=1 // pred_check
      _
    $region19: #{tpu_custom_call.1} parent=1 // pred_check_branch
      %222 = sbr.rel (0) target = $region21
    $region20: #{tpu_custom_call.1} parent=1 // pred_region
      %224 = vsyncadd [#allocation4], 0
      %s226 = sshll.u32 [#allocation7], 4
      %s227 = int_to_ptr.vmem [resolvable:$true] %s226
      %s228 = sshll.u32 %s2, 4
      %s229 = int_to_ptr.hbm [resolvable:$true] %s228
      %231 = dma.vmem_to_hbm [thread:$0]  %s227, 16, %s229, [#allocation4]
    $region21: #{tpu_custom_call.1} parent=1 // pred_fallthru
      _
    // Predicated region
    $region22: #{tpu_custom_call.1} parent=1 // pred_check
      _
    $region23: #{tpu_custom_call.1} parent=1 // pred_check_branch
      %233 = sbr.rel (0) target = $region25
    $region24: #{tpu_custom_call.1} parent=1 // pred_region
      %235 = dma.done [#allocation4], 16
    $region25: #{tpu_custom_call.1} parent=1 // pred_fallthru
      _
    %236 = vsyncpa [#allocation3], 1
    %237 = vsyncpa [#allocation6], 1
    %238 = vsyncpa [#allocation4], 1

</llo_original>
